<compile_context>
chip_gen: v5e
topology: v5e:2x2
jax: 0.10.0
libtpu: 0.0.40
codegen_flags: <defaults>
</compile_context>

<pallas_src>
import functools
import math

import jax
import jax.numpy as jnp
from jax.experimental import pallas as pl
from jax.experimental.pallas import tpu as pltpu

# ---------------- config (small, BERT-like) ----------------
BATCH = 2
SEQ = 8
HIDDEN = 32
NUM_HEADS = 4
HEAD_SIZE = HIDDEN // NUM_HEADS  # 8


def _self_attention_kernel(x_ref, wqkv_ref, bqkv_ref, kmask_ref, out_ref, *,
                           batch, seq, hidden, num_heads, head_size):
    """Whole-problem kernel (no grid).

    x_ref:     (B*S, H)   flattened hidden states
    wqkv_ref:  (H, 3H)    fused, pre-transposed projection weights [Q | K | V],
                          with 1/sqrt(hd) already folded into the Q columns
    bqkv_ref:  (1, 3H)    fused projection biases (Q part pre-scaled)
    kmask_ref: (B*S, 1)   multiplicative key mask, one value per (b, s) row
    out_ref:   (B*S, H)   merged-head context layer (reshaped in wrapper)
    """
    # Single fused Q/K/V projection matmul on the MXU (f32 accumulate).
    qkv = jnp.dot(x_ref[...], wqkv_ref[...],
                  preferred_element_type=jnp.float32) + bqkv_ref[...]

    q_all = qkv[:, :hidden]                                 # [B*S, H] (scaled)
    # Mask K rows once: (q @ (k*m)^T) == (q @ k^T) * m over the key axis,
    # exactly the module's multiplicative `scores * attention_mask`.
    # TODO(synk): HuggingFace BERT uses an additive mask; this module
    # multiplies, so multiplicative semantics are kept on purpose.
    k_all = qkv[:, hidden:2 * hidden] * kmask_ref[...]      # [B*S, H]
    v_all = qkv[:, 2 * hidden:]                             # [B*S, H]

    # Head loop: tiny and static (nh=4). Batch stays vectorized in the
    # sublane axis; no lane-axis (nh, hd) splits, consistent einsum layouts.
    # TODO(synk): at real BERT sizes (S>=128, H>=768) retile flash-style:
    # grid over (batch, q-block) with the kv axis "arbitrary", weights
    # resident in VMEM (constant index_map), bf16 MXU inputs + f32 scratch
    # accumulator, lane-dense output slab; 256-aligned M/N tiles on v6e/v7x
    # (128 on v5e, keep vector math f32 there), kv block sizes / Buffered
    # depth re-derived against v7x's 64 MiB VMEM with vmem_limit_bytes set,
    # and dimension_semantics=("parallel","parallel","arbitrary") so v7x's
    # two TensorCores split the grid.
    head_ctx = []
    for h in range(num_heads):
        lanes = slice(h * head_size, (h + 1) * head_size)
        q = q_all[:, lanes].reshape(batch, seq, head_size)   # [B, S, hd]
        k = k_all[:, lanes].reshape(batch, seq, head_size)
        v = v_all[:, lanes].reshape(batch, seq, head_size)

        # Scores per batch for this head: [B, S_q, S_k]; scale + mask already
        # folded into q / k respectively.
        s = jnp.einsum('bqd,bkd->bqk', q, k,
                       preferred_element_type=jnp.float32)

        # Softmax over keys; denominator reciprocal on the EUP (approx=True).
        m = jnp.max(s, axis=-1, keepdims=True)
        e = jnp.exp(s - m)
        p = e * pl.reciprocal(jnp.sum(e, axis=-1, keepdims=True), approx=True)

        # Dropout: identity (inference semantics).

        # Context for this head: [B, S, hd] -> [B*S, hd].
        ctx = jnp.einsum('bqk,bkd->bqd', p, v,
                         preferred_element_type=jnp.float32)
        head_ctx.append(ctx.reshape(batch * seq, head_size))

    # Single lane-contiguous store of all heads / batches at once.
    out_ref[...] = jnp.concatenate(head_ctx, axis=-1).astype(out_ref.dtype)


@functools.partial(jax.jit, static_argnames=("num_heads",))
def bert_self_attention(hidden_states, attention_mask, params, *,
                        num_heads=NUM_HEADS):
    """hidden_states: [B, S, H] f32; attention_mask: [B, 1, 1, S] f32."""
    B, S, H = hidden_states.shape
    head_size = H // num_heads
    wq, bq, wk, bk, wv, bv = params

    # Host-side layout plumbing (free):
    #  * fuse Q/K/V into one pre-transposed weight [in=H, out=3H],
    #  * fold the 1/sqrt(head_size) score scale into the Q weights/bias.
    scale = 1.0 / math.sqrt(head_size)
    w_qkv = jnp.concatenate([wq.T * scale, wk.T, wv.T], axis=1)   # [H, 3H]
    b_qkv = jnp.concatenate([bq * scale, bk, bv]).reshape(1, 3 * H)
    x_flat = hidden_states.reshape(B * S, H)                      # [B*S, H]
    # One mask value per flattened key row (b, s); broadcast over lanes.
    kmask = attention_mask.reshape(B * S, 1)                      # [B*S, 1]

    kernel = functools.partial(_self_attention_kernel, batch=B, seq=S,
                               hidden=H, num_heads=num_heads,
                               head_size=head_size)

    out_flat = pl.pallas_call(
        kernel,
        out_shape=jax.ShapeDtypeStruct((B * S, H), hidden_states.dtype),
        in_specs=[pl.BlockSpec(memory_space=pltpu.MemorySpace.VMEM)] * 4,
        out_specs=pl.BlockSpec(memory_space=pltpu.MemorySpace.VMEM),
    )(x_flat, w_qkv, b_qkv, kmask)
    return out_flat.reshape(B, S, H)


def _reference(hidden_states, attention_mask, params, *, num_heads=NUM_HEADS):
    """Plain-JAX reference reproducing the PyTorch forward exactly."""
    B, S, H = hidden_states.shape
    hd = H // num_heads
    wq, bq, wk, bk, wv, bv = params

    def proj(x, w, b):
        return x @ w.T + b

    def split(x):  # [B,S,H] -> [B,nh,S,hd]
        return x.reshape(B, S, num_heads, hd).transpose(0, 2, 1, 3)

    q = split(proj(hidden_states, wq, bq))
    k = split(proj(hidden_states, wk, bk))
    v = split(proj(hidden_states, wv, bv))
    scores = jnp.einsum('bnqd,bnkd->bnqk', q, k) / math.sqrt(hd)
    scores = scores * attention_mask
    probs = jax.nn.softmax(scores, axis=-1)
    ctx = jnp.einsum('bnqk,bnkd->bnqd', probs, v)
    return ctx.transpose(0, 2, 1, 3).reshape(B, S, H)


if __name__ == "__main__":
    key = jax.random.PRNGKey(0)
    k_x, k_m, kq, kbq, kk, kbk, kv, kbv = jax.random.split(key, 8)

    # Deterministic parameter init (mimic nn.Linear uniform bound).
    bound = 1.0 / math.sqrt(HIDDEN)
    wq = jax.random.uniform(kq, (HIDDEN, HIDDEN), jnp.float32, -bound, bound)
    bq = jax.random.uniform(kbq, (HIDDEN,), jnp.float32, -bound, bound)
    wk = jax.random.uniform(kk, (HIDDEN, HIDDEN), jnp.float32, -bound, bound)
    bk = jax.random.uniform(kbk, (HIDDEN,), jnp.float32, -bound, bound)
    wv = jax.random.uniform(kv, (HIDDEN, HIDDEN), jnp.float32, -bound, bound)
    bv = jax.random.uniform(kbv, (HIDDEN,), jnp.float32, -bound, bound)
    params = (wq, bq, wk, bk, wv, bv)

    hidden_states = jax.random.normal(k_x, (BATCH, SEQ, HIDDEN), jnp.float32)
    # Multiplicative mask (1 = keep, 0 = mask), shape [B, 1, 1, S].
    attention_mask = (jax.random.uniform(k_m, (BATCH, 1, 1, SEQ)) > 0.2
                      ).astype(jnp.float32)

    out = bert_self_attention(hidden_states, attention_mask, params)
    out = jax.block_until_ready(out)

    ref = _reference(hidden_states, attention_mask, params)
    assert out.shape == (BATCH, SEQ, HIDDEN)
    # Tolerance loosened vs 1e-5 because pl.reciprocal(approx=True) uses the
    # EUP's approximate rcp on the softmax denominator (~1e-3-level rel err);
    # structural bugs would produce errors orders of magnitude larger.
    assert jnp.allclose(out, ref, atol=1e-2, rtol=1e-2), "mismatch vs reference"

    print("KERNEL_OK")
</pallas_src>

<mosaic_0001>
module attributes {stable_mosaic.version = 11 : i64} {
  func.func @_self_attention_kernel(%arg0: memref<16x32xf32, #tpu.memory_space<vmem>>, %arg1: memref<32x96xf32, #tpu.memory_space<vmem>>, %arg2: memref<1x96xf32, #tpu.memory_space<vmem>>, %arg3: memref<16x1xf32, #tpu.memory_space<vmem>>, %arg4: memref<16x32xf32, #tpu.memory_space<vmem>>) attributes {dimension_semantics = [], scalar_prefetch = 0 : i64, scratch_operands = 0 : i64, tpu.core_type = #tpu.core_type<tc>} {
    %c0 = arith.constant 0 : index
    %c0_0 = arith.constant 0 : index
    %0 = vector.load %arg0[%c0, %c0_0] : memref<16x32xf32, #tpu.memory_space<vmem>>, vector<16x32xf32>
    %c0_1 = arith.constant 0 : index
    %c0_2 = arith.constant 0 : index
    %1 = vector.load %arg1[%c0_1, %c0_2] : memref<32x96xf32, #tpu.memory_space<vmem>>, vector<32x96xf32>
    %cst = arith.constant dense<0.000000e+00> : vector<16x96xf32>
    %2 = tpu.matmul %0, %1, %cst {dimension_numbers = #tpu.dot_dimension_numbers<[1], [0], [0], [1], [0, 0, 1, 1], [], []>} : vector<16x32xf32>, vector<32x96xf32>, vector<16x96xf32> -> vector<16x96xf32>
    %c0_3 = arith.constant 0 : index
    %c0_4 = arith.constant 0 : index
    %3 = vector.load %arg2[%c0_3, %c0_4] : memref<1x96xf32, #tpu.memory_space<vmem>>, vector<1x96xf32>
    %4 = vector.broadcast %3 : vector<1x96xf32> to vector<16x96xf32>
    %5 = arith.addf %2, %4 : vector<16x96xf32>
    %6 = vector.extract_strided_slice %5 {offsets = [0, 0], sizes = [16, 32], strides = [1, 1]} : vector<16x96xf32> to vector<16x32xf32>
    %7 = vector.extract_strided_slice %5 {offsets = [0, 32], sizes = [16, 32], strides = [1, 1]} : vector<16x96xf32> to vector<16x32xf32>
    %c0_5 = arith.constant 0 : index
    %c0_6 = arith.constant 0 : index
    %8 = vector.load %arg3[%c0_5, %c0_6] : memref<16x1xf32, #tpu.memory_space<vmem>>, vector<16x1xf32>
    %9 = vector.broadcast %8 : vector<16x1xf32> to vector<16x32xf32>
    %10 = arith.mulf %7, %9 : vector<16x32xf32>
    %11 = vector.extract_strided_slice %5 {offsets = [0, 64], sizes = [16, 32], strides = [1, 1]} : vector<16x96xf32> to vector<16x32xf32>
    %12 = vector.extract_strided_slice %6 {offsets = [0, 0], sizes = [16, 8], strides = [1, 1]} : vector<16x32xf32> to vector<16x8xf32>
    %13 = vector.shape_cast %12 : vector<16x8xf32> to vector<2x8x8xf32>
    %14 = vector.extract_strided_slice %10 {offsets = [0, 0], sizes = [16, 8], strides = [1, 1]} : vector<16x32xf32> to vector<16x8xf32>
    %15 = vector.shape_cast %14 : vector<16x8xf32> to vector<2x8x8xf32>
    %16 = vector.extract_strided_slice %11 {offsets = [0, 0], sizes = [16, 8], strides = [1, 1]} : vector<16x32xf32> to vector<16x8xf32>
    %17 = vector.shape_cast %16 : vector<16x8xf32> to vector<2x8x8xf32>
    "tpu.trace_start"() <{level = 10 : i32, message = "bqd,bkd->bqk"}> : () -> ()
    %cst_7 = arith.constant dense<0.000000e+00> : vector<2x8x8xf32>
    %18 = tpu.matmul %13, %15, %cst_7 {dimension_numbers = #tpu.dot_dimension_numbers<[2], [2], [1], [1], [0, 0, 0, 1, 1, 1], [0], [0]>} : vector<2x8x8xf32>, vector<2x8x8xf32>, vector<2x8x8xf32> -> vector<2x8x8xf32>
    "tpu.trace_stop"() : () -> ()
    %cst_8 = arith.constant dense<0xFF800000> : vector<2x8xf32>
    %19 = vector.multi_reduction <maximumf>, %18, %cst_8 [2] : vector<2x8x8xf32> to vector<2x8xf32>
    %20 = vector.shape_cast %19 : vector<2x8xf32> to vector<2x8x1xf32>
    %21 = vector.broadcast %20 : vector<2x8x1xf32> to vector<2x8x8xf32>
    %22 = arith.subf %18, %21 : vector<2x8x8xf32>
    %23 = math.exp %22 : vector<2x8x8xf32>
    %cst_9 = arith.constant dense<0.000000e+00> : vector<2x8xf32>
    %24 = vector.multi_reduction <add>, %23, %cst_9 [2] : vector<2x8x8xf32> to vector<2x8xf32>
    %25 = vector.shape_cast %24 : vector<2x8xf32> to vector<2x8x1xf32>
    %26 = tpu.reciprocal %25 {approx = true} : vector<2x8x1xf32> -> vector<2x8x1xf32>
    %27 = vector.broadcast %26 : vector<2x8x1xf32> to vector<2x8x8xf32>
    %28 = arith.mulf %23, %27 : vector<2x8x8xf32>
    "tpu.trace_start"() <{level = 10 : i32, message = "bqk,bkd->bqd"}> : () -> ()
    %cst_10 = arith.constant dense<0.000000e+00> : vector<2x8x8xf32>
    %29 = tpu.matmul %28, %17, %cst_10 {dimension_numbers = #tpu.dot_dimension_numbers<[2], [1], [1], [2], [0, 0, 0, 1, 1, 2], [0], [0]>} : vector<2x8x8xf32>, vector<2x8x8xf32>, vector<2x8x8xf32> -> vector<2x8x8xf32>
    "tpu.trace_stop"() : () -> ()
    %30 = vector.shape_cast %29 : vector<2x8x8xf32> to vector<16x8xf32>
    %31 = vector.extract_strided_slice %6 {offsets = [0, 8], sizes = [16, 8], strides = [1, 1]} : vector<16x32xf32> to vector<16x8xf32>
    %32 = vector.shape_cast %31 : vector<16x8xf32> to vector<2x8x8xf32>
    %33 = vector.extract_strided_slice %10 {offsets = [0, 8], sizes = [16, 8], strides = [1, 1]} : vector<16x32xf32> to vector<16x8xf32>
    %34 = vector.shape_cast %33 : vector<16x8xf32> to vector<2x8x8xf32>
    %35 = vector.extract_strided_slice %11 {offsets = [0, 8], sizes = [16, 8], strides = [1, 1]} : vector<16x32xf32> to vector<16x8xf32>
    %36 = vector.shape_cast %35 : vector<16x8xf32> to vector<2x8x8xf32>
    "tpu.trace_start"() <{level = 10 : i32, message = "bqd,bkd->bqk"}> : () -> ()
    %cst_11 = arith.constant dense<0.000000e+00> : vector<2x8x8xf32>
    %37 = tpu.matmul %32, %34, %cst_11 {dimension_numbers = #tpu.dot_dimension_numbers<[2], [2], [1], [1], [0, 0, 0, 1, 1, 1], [0], [0]>} : vector<2x8x8xf32>, vector<2x8x8xf32>, vector<2x8x8xf32> -> vector<2x8x8xf32>
    "tpu.trace_stop"() : () -> ()
    %cst_12 = arith.constant dense<0xFF800000> : vector<2x8xf32>
    %38 = vector.multi_reduction <maximumf>, %37, %cst_12 [2] : vector<2x8x8xf32> to vector<2x8xf32>
    %39 = vector.shape_cast %38 : vector<2x8xf32> to vector<2x8x1xf32>
    %40 = vector.broadcast %39 : vector<2x8x1xf32> to vector<2x8x8xf32>
    %41 = arith.subf %37, %40 : vector<2x8x8xf32>
    %42 = math.exp %41 : vector<2x8x8xf32>
    %cst_13 = arith.constant dense<0.000000e+00> : vector<2x8xf32>
    %43 = vector.multi_reduction <add>, %42, %cst_13 [2] : vector<2x8x8xf32> to vector<2x8xf32>
    %44 = vector.shape_cast %43 : vector<2x8xf32> to vector<2x8x1xf32>
    %45 = tpu.reciprocal %44 {approx = true} : vector<2x8x1xf32> -> vector<2x8x1xf32>
    %46 = vector.broadcast %45 : vector<2x8x1xf32> to vector<2x8x8xf32>
    %47 = arith.mulf %42, %46 : vector<2x8x8xf32>
    "tpu.trace_start"() <{level = 10 : i32, message = "bqk,bkd->bqd"}> : () -> ()
    %cst_14 = arith.constant dense<0.000000e+00> : vector<2x8x8xf32>
    %48 = tpu.matmul %47, %36, %cst_14 {dimension_numbers = #tpu.dot_dimension_numbers<[2], [1], [1], [2], [0, 0, 0, 1, 1, 2], [0], [0]>} : vector<2x8x8xf32>, vector<2x8x8xf32>, vector<2x8x8xf32> -> vector<2x8x8xf32>
    "tpu.trace_stop"() : () -> ()
    %49 = vector.shape_cast %48 : vector<2x8x8xf32> to vector<16x8xf32>
    %50 = vector.extract_strided_slice %6 {offsets = [0, 16], sizes = [16, 8], strides = [1, 1]} : vector<16x32xf32> to vector<16x8xf32>
    %51 = vector.shape_cast %50 : vector<16x8xf32> to vector<2x8x8xf32>
    %52 = vector.extract_strided_slice %10 {offsets = [0, 16], sizes = [16, 8], strides = [1, 1]} : vector<16x32xf32> to vector<16x8xf32>
    %53 = vector.shape_cast %52 : vector<16x8xf32> to vector<2x8x8xf32>
    %54 = vector.extract_strided_slice %11 {offsets = [0, 16], sizes = [16, 8], strides = [1, 1]} : vector<16x32xf32> to vector<16x8xf32>
    %55 = vector.shape_cast %54 : vector<16x8xf32> to vector<2x8x8xf32>
    "tpu.trace_start"() <{level = 10 : i32, message = "bqd,bkd->bqk"}> : () -> ()
    %cst_15 = arith.constant dense<0.000000e+00> : vector<2x8x8xf32>
    %56 = tpu.matmul %51, %53, %cst_15 {dimension_numbers = #tpu.dot_dimension_numbers<[2], [2], [1], [1], [0, 0, 0, 1, 1, 1], [0], [0]>} : vector<2x8x8xf32>, vector<2x8x8xf32>, vector<2x8x8xf32> -> vector<2x8x8xf32>
    "tpu.trace_stop"() : () -> ()
    %cst_16 = arith.constant dense<0xFF800000> : vector<2x8xf32>
    %57 = vector.multi_reduction <maximumf>, %56, %cst_16 [2] : vector<2x8x8xf32> to vector<2x8xf32>
    %58 = vector.shape_cast %57 : vector<2x8xf32> to vector<2x8x1xf32>
    %59 = vector.broadcast %58 : vector<2x8x1xf32> to vector<2x8x8xf32>
    %60 = arith.subf %56, %59 : vector<2x8x8xf32>
    %61 = math.exp %60 : vector<2x8x8xf32>
    %cst_17 = arith.constant dense<0.000000e+00> : vector<2x8xf32>
    %62 = vector.multi_reduction <add>, %61, %cst_17 [2] : vector<2x8x8xf32> to vector<2x8xf32>
    %63 = vector.shape_cast %62 : vector<2x8xf32> to vector<2x8x1xf32>
    %64 = tpu.reciprocal %63 {approx = true} : vector<2x8x1xf32> -> vector<2x8x1xf32>
    %65 = vector.broadcast %64 : vector<2x8x1xf32> to vector<2x8x8xf32>
    %66 = arith.mulf %61, %65 : vector<2x8x8xf32>
    "tpu.trace_start"() <{level = 10 : i32, message = "bqk,bkd->bqd"}> : () -> ()
    %cst_18 = arith.constant dense<0.000000e+00> : vector<2x8x8xf32>
    %67 = tpu.matmul %66, %55, %cst_18 {dimension_numbers = #tpu.dot_dimension_numbers<[2], [1], [1], [2], [0, 0, 0, 1, 1, 2], [0], [0]>} : vector<2x8x8xf32>, vector<2x8x8xf32>, vector<2x8x8xf32> -> vector<2x8x8xf32>
    "tpu.trace_stop"() : () -> ()
    %68 = vector.shape_cast %67 : vector<2x8x8xf32> to vector<16x8xf32>
    %69 = vector.extract_strided_slice %6 {offsets = [0, 24], sizes = [16, 8], strides = [1, 1]} : vector<16x32xf32> to vector<16x8xf32>
    %70 = vector.shape_cast %69 : vector<16x8xf32> to vector<2x8x8xf32>
    %71 = vector.extract_strided_slice %10 {offsets = [0, 24], sizes = [16, 8], strides = [1, 1]} : vector<16x32xf32> to vector<16x8xf32>
    %72 = vector.shape_cast %71 : vector<16x8xf32> to vector<2x8x8xf32>
    %73 = vector.extract_strided_slice %11 {offsets = [0, 24], sizes = [16, 8], strides = [1, 1]} : vector<16x32xf32> to vector<16x8xf32>
    %74 = vector.shape_cast %73 : vector<16x8xf32> to vector<2x8x8xf32>
    "tpu.trace_start"() <{level = 10 : i32, message = "bqd,bkd->bqk"}> : () -> ()
    %cst_19 = arith.constant dense<0.000000e+00> : vector<2x8x8xf32>
    %75 = tpu.matmul %70, %72, %cst_19 {dimension_numbers = #tpu.dot_dimension_numbers<[2], [2], [1], [1], [0, 0, 0, 1, 1, 1], [0], [0]>} : vector<2x8x8xf32>, vector<2x8x8xf32>, vector<2x8x8xf32> -> vector<2x8x8xf32>
    "tpu.trace_stop"() : () -> ()
    %cst_20 = arith.constant dense<0xFF800000> : vector<2x8xf32>
    %76 = vector.multi_reduction <maximumf>, %75, %cst_20 [2] : vector<2x8x8xf32> to vector<2x8xf32>
    %77 = vector.shape_cast %76 : vector<2x8xf32> to vector<2x8x1xf32>
    %78 = vector.broadcast %77 : vector<2x8x1xf32> to vector<2x8x8xf32>
    %79 = arith.subf %75, %78 : vector<2x8x8xf32>
    %80 = math.exp %79 : vector<2x8x8xf32>
    %cst_21 = arith.constant dense<0.000000e+00> : vector<2x8xf32>
    %81 = vector.multi_reduction <add>, %80, %cst_21 [2] : vector<2x8x8xf32> to vector<2x8xf32>
    %82 = vector.shape_cast %81 : vector<2x8xf32> to vector<2x8x1xf32>
    %83 = tpu.reciprocal %82 {approx = true} : vector<2x8x1xf32> -> vector<2x8x1xf32>
    %84 = vector.broadcast %83 : vector<2x8x1xf32> to vector<2x8x8xf32>
    %85 = arith.mulf %80, %84 : vector<2x8x8xf32>
    "tpu.trace_start"() <{level = 10 : i32, message = "bqk,bkd->bqd"}> : () -> ()
    %cst_22 = arith.constant dense<0.000000e+00> : vector<2x8x8xf32>
    %86 = tpu.matmul %85, %74, %cst_22 {dimension_numbers = #tpu.dot_dimension_numbers<[2], [1], [1], [2], [0, 0, 0, 1, 1, 2], [0], [0]>} : vector<2x8x8xf32>, vector<2x8x8xf32>, vector<2x8x8xf32> -> vector<2x8x8xf32>
    "tpu.trace_stop"() : () -> ()
    %87 = vector.shape_cast %86 : vector<2x8x8xf32> to vector<16x8xf32>
    %88 = tpu.concatenate %30, %49, %68, %87 in 1 : vector<16x8xf32>, vector<16x8xf32>, vector<16x8xf32>, vector<16x8xf32> -> vector<16x32xf32>
    %c0_23 = arith.constant 0 : index
    %c0_24 = arith.constant 0 : index
    %89 = vector.load %arg4[%c0_23, %c0_24] : memref<16x32xf32, #tpu.memory_space<vmem>>, vector<16x32xf32>
    tpu.vector_store %arg4[%c0_23, %c0_24], %88 {strides = array<i32>} : memref<16x32xf32, #tpu.memory_space<vmem>>, vector<16x32xf32>,
    return
  }
}

</mosaic_0001>

<llo_original>
// kernel: bert_self_attention.1
$region0: #{bert_self_attention.1}
  #allocation0 [shape = 'u32[]', space=smem, size = 0x4, offset = 0x4, fixed_abs, tag = 'smem constant byte address 0x4 - core index']
  #allocation1 [shape = 'u32[72,128]{1,0:T(1,128)}', space=vmem, size = 0x9000, scoped, tag = 'internal scratch']
  %s0 = inlined_call_operand.vmem [shape: f32[16,32], index: 0, kind: input, shape index: {}]
  %s1 = inlined_call_operand.vmem [shape: f32[32,96], index: 1, kind: input, shape index: {}]
  %s2 = inlined_call_operand.vmem [shape: f32[1,96], index: 2, kind: input, shape index: {}]
  %s3 = inlined_call_operand.vmem [shape: f32[16,1], index: 3, kind: input, shape index: {}]
  %s4 = inlined_call_operand.hbm [shape: f32[16,32], index: 4, kind: output, shape index: {}]
  %s5 = sld [smem:[#allocation0]]
  $region26: #{bert_self_attention.1} parent=0
    _
  %s7 = ssub.s32 1, %s5
  %s8 = scalar_select 0, %s7, %s5
  $region1: #{bert_self_attention.1} parent=0
    #allocation2 [shape = 'u8[8192]{0}', space=vmem, size = 0x2000, scoped, tag = 'output window, operand 0, single buffered']
    #allocation3 [shape = 's32[1]{0}', space=sflag, size = 0x4, scoped, tag = 'scoped memory for bert_self_attention.1']
    %9 = vsyncpa [#allocation3], 0
    // Predicated region
    $region2: #{bert_self_attention.1} parent=1 // pred_check
      _
    $region3: #{bert_self_attention.1} parent=1 // pred_check_branch
      %11 = sbr.rel (0) target = $region5
    $region4: #{bert_self_attention.1} parent=1 // pred_region
      _
    $region5: #{bert_self_attention.1} parent=1 // pred_fallthru
      _
    // Predicated region
    $region6: #{bert_self_attention.1} parent=1 // pred_check
      _
    $region7: #{bert_self_attention.1} parent=1 // pred_check_branch
      %13 = sbr.rel (0) target = $region9
    $region8: #{bert_self_attention.1} parent=1 // pred_region
      _
    $region9: #{bert_self_attention.1} parent=1 // pred_fallthru
      _
    // Predicated region
    $region10: #{bert_self_attention.1} parent=1 // pred_check
      _
    $region11: #{bert_self_attention.1} parent=1 // pred_check_branch
      %15 = sbr.rel (0) target = $region13
    $region12: #{bert_self_attention.1} parent=1 // pred_region
      _
    $region13: #{bert_self_attention.1} parent=1 // pred_fallthru
      _
    // Predicated region
    $region14: #{bert_self_attention.1} parent=1 // pred_check
      _
    $region15: #{bert_self_attention.1} parent=1 // pred_check_branch
      %17 = sbr.rel (0) target = $region17
    $region16: #{bert_self_attention.1} parent=1 // pred_region
      _
    $region17: #{bert_self_attention.1} parent=1 // pred_fallthru
      _
    %v18 = vld [vmem:[%s0] sm:$0xff]
    %v19 = vld [vmem:[%s0 + $0x8] sm:$0xff]
    %v20 = vld [vmem:[%s1] sm:$0xff]
    %v21 = vld [vmem:[%s1 + $0x8] sm:$0xff]
    %v22 = vld [vmem:[%s1 + $0x10] sm:$0xff]
    %v23 = vld [vmem:[%s1 + $0x18] sm:$0xff]
    %v24 = vld [vmem:[%s2] sm:$0x1]
    %v26 = vperm.slane %v24, 0
    %vm28 = vcmask 261120
    %v30 = vsel %vm28, %v18, 0
    %v33 = vsel %vm28, %v19, 0
    %35 = vmatpush.msra.mxu0 0.0
    %36 = vmatpush.msra.mxu0 0.0
    %37 = vmatpush.msra.mxu0 0.0
    %38 = vmatpush.msra.mxu0 0.0
    %39 = vmatpush.msra.mxu0 0.0
    %40 = vmatpush.msra.mxu0 0.0
    %41 = vmatpush.msra.mxu0 0.0
    %42 = vmatpush.msra.mxu0 0.0
    %43 = vmatpush.msra.mxu0 0.0
    %44 = vmatpush.msra.mxu0 0.0
    %45 = vmatpush.msra.mxu0 0.0
    %46 = vmatpush.msra.mxu0 0.0
    %47 = vmatpush.msra.mxu0 %v23
    %48 = vmatpush.msra.mxu0 %v22
    %49 = vmatpush.msra.mxu0 %v21
    %50 = vmatpush.msra.mxu0 %v20
    %51 = vmatmul.f32.gmra.mxu0 %v30
    %v52 = vpop.f32.mrf.mxu0
    %v53 = vadd.f32 %v26, %v52
    %54 = vmatmul.f32.gmra.mxu0 %v33
    %v55 = vpop.f32.mrf.mxu0
    %v56 = vadd.f32 %v26, %v55
    %57 = vdwg.mxu0
    %v58 = vld [vmem:[%s3] sm:$0xff]
    %v59 = vld [vmem:[%s3 + $0x8] sm:$0xff]
    %61 = vset.pattern.permute.xlu0 0
    %62 = vperm.xlu0 %61, %v58
    %v63 = vpop.permute.xlu0 %62
    %66 = vset.pattern.permute.xlu0 0
    %67 = vperm.xlu0 %66, %v59
    %v68 = vpop.permute.xlu0 %67
    %v70 = vmul.f32 %v53, %v63
    %v71 = vmul.f32 %v56, %v68
    %73 = vrot.lane.b32.xlu0 %v70, 96
    %v74 = vpop.permute.xlu0 %73
    %vm75 = vcmask 64512
    %v77 = vsel %vm75, %v53, 0
    %v79 = vsel %vm75, %v74, 0
    %81 = vmatpush.xpose.msra.mxu0 0.0
    %82 = vmatpush.xpose.msra.mxu0 0.0
    %83 = vmatpush.xpose.msra.mxu0 0.0
    %84 = vmatpush.xpose.msra.mxu0 0.0
    %85 = vmatpush.xpose.msra.mxu0 0.0
    %86 = vmatpush.xpose.msra.mxu0 0.0
    %87 = vmatpush.xpose.msra.mxu0 0.0
    %88 = vmatpush.xpose.msra.mxu0 0.0
    %89 = vmatpush.xpose.msra.mxu0 0.0
    %90 = vmatpush.xpose.msra.mxu0 0.0
    %91 = vmatpush.xpose.msra.mxu0 0.0
    %92 = vmatpush.xpose.msra.mxu0 0.0
    %93 = vmatpush.xpose.msra.mxu0 0.0
    %94 = vmatpush.xpose.msra.mxu0 0.0
    %95 = vmatpush.xpose.msra.mxu0 0.0
    %96 = vmatpush.xpose.msra.mxu0 %v79
    %97 = vmatmul.f32.gmra.mxu0 %v77
    %v98 = vpop.f32.mrf.mxu0
    %v99 = vadd.f32 0.0, %v98
    %100 = vdwg.mxu0
    %102 = vrot.lane.b32.xlu0 %v71, 96
    %v103 = vpop.permute.xlu0 %102
    %v105 = vsel %vm75, %v56, 0
    %v107 = vsel %vm75, %v103, 0
    %109 = vmatpush.xpose.msra.mxu0 0.0
    %110 = vmatpush.xpose.msra.mxu0 0.0
    %111 = vmatpush.xpose.msra.mxu0 0.0
    %112 = vmatpush.xpose.msra.mxu0 0.0
    %113 = vmatpush.xpose.msra.mxu0 0.0
    %114 = vmatpush.xpose.msra.mxu0 0.0
    %115 = vmatpush.xpose.msra.mxu0 0.0
    %116 = vmatpush.xpose.msra.mxu0 0.0
    %117 = vmatpush.xpose.msra.mxu0 0.0
    %118 = vmatpush.xpose.msra.mxu0 0.0
    %119 = vmatpush.xpose.msra.mxu0 0.0
    %120 = vmatpush.xpose.msra.mxu0 0.0
    %121 = vmatpush.xpose.msra.mxu0 0.0
    %122 = vmatpush.xpose.msra.mxu0 0.0
    %123 = vmatpush.xpose.msra.mxu0 0.0
    %124 = vmatpush.xpose.msra.mxu0 %v107
    %125 = vmatmul.f32.gmra.mxu0 %v105
    %v126 = vpop.f32.mrf.mxu0
    %v127 = vadd.f32 0.0, %v126
    %128 = vdwg.mxu0
    %v129 = vsel %vm75, %v99, -inf
    %130 = vmax.xlane.f32.xlu0 %v129
    %v131 = vpop.xlane.xlu0 %130
    %v132 = vsel %vm75, %v127, -inf
    %133 = vmax.xlane.f32.xlu0 %v132
    %v134 = vpop.xlane.xlu0 %133
    %v135 = vsub.f32 %v99, %v131
    %v136 = vsub.f32 %v127, %v134
    %v137 = vmul.f32 %v135, 1.442695
    %v138 = vpow.pop %v137
    %v139 = vmul.f32 %v136, 1.442695
    %v140 = vpow.pop %v139
    %v141 = vsel %vm75, %v138, 0.0
    %142 = vadd.xlane.f32.xlu0 %v141
    %v143 = vpop.xlane.xlu0 %142
    %v144 = vsel %vm75, %v140, 0.0
    %145 = vadd.xlane.f32.xlu0 %v144
    %v146 = vpop.xlane.xlu0 %145
    %v147 = vrcp.pop %v143
    %v148 = vrcp.pop %v146
    %v149 = vmul.f32 %v138, %v147
    %v150 = vmul.f32 %v140, %v148
    %151 = vrot.lane.b32.xlu0 %v53, 64
    %v152 = vpop.permute.xlu0 %151
    %v155 = vsel %vm75, %v149, 0
    %157 = vmatpush.msra.mxu0 0.0
    %158 = vmatpush.msra.mxu0 0.0
    %159 = vmatpush.msra.mxu0 0.0
    %160 = vmatpush.msra.mxu0 0.0
    %161 = vmatpush.msra.mxu0 0.0
    %162 = vmatpush.msra.mxu0 0.0
    %163 = vmatpush.msra.mxu0 0.0
    %164 = vmatpush.msra.mxu0 0.0
    %165 = vmatpush.msra.mxu0 0.0
    %166 = vmatpush.msra.mxu0 0.0
    %167 = vmatpush.msra.mxu0 0.0
    %168 = vmatpush.msra.mxu0 0.0
    %169 = vmatpush.msra.mxu0 0.0
    %170 = vmatpush.msra.mxu0 0.0
    %171 = vmatpush.msra.mxu0 0.0
    %172 = vmatpush.msra.mxu0 %v152
    %173 = vmatmul.f32.gmra.mxu0 %v155
    %v174 = vpop.f32.mrf.mxu0
    %v175 = vadd.f32 0.0, %v174
    %176 = vdwg.mxu0
    %177 = vrot.lane.b32.xlu0 %v56, 64
    %v178 = vpop.permute.xlu0 %177
    %v181 = vsel %vm75, %v150, 0
    %183 = vmatpush.msra.mxu0 0.0
    %184 = vmatpush.msra.mxu0 0.0
    %185 = vmatpush.msra.mxu0 0.0
    %186 = vmatpush.msra.mxu0 0.0
    %187 = vmatpush.msra.mxu0 0.0
    %188 = vmatpush.msra.mxu0 0.0
    %189 = vmatpush.msra.mxu0 0.0
    %190 = vmatpush.msra.mxu0 0.0
    %191 = vmatpush.msra.mxu0 0.0
    %192 = vmatpush.msra.mxu0 0.0
    %193 = vmatpush.msra.mxu0 0.0
    %194 = vmatpush.msra.mxu0 0.0
    %195 = vmatpush.msra.mxu0 0.0
    %196 = vmatpush.msra.mxu0 0.0
    %197 = vmatpush.msra.mxu0 0.0
    %198 = vmatpush.msra.mxu0 %v178
    %199 = vmatmul.f32.gmra.mxu0 %v181
    %v200 = vpop.f32.mrf.mxu0
    %v201 = vadd.f32 0.0, %v200
    %202 = vdwg.mxu0
    %203 = vrot.lane.b32.xlu0 %v53, 120
    %v204 = vpop.permute.xlu0 %203
    %205 = vrot.lane.b32.xlu0 %v70, 88
    %v206 = vpop.permute.xlu0 %205
    %v207 = vsel %vm75, %v204, 0
    %v209 = vsel %vm75, %v206, 0
    %211 = vmatpush.xpose.msra.mxu0 0.0
    %212 = vmatpush.xpose.msra.mxu0 0.0
    %213 = vmatpush.xpose.msra.mxu0 0.0
    %214 = vmatpush.xpose.msra.mxu0 0.0
    %215 = vmatpush.xpose.msra.mxu0 0.0
    %216 = vmatpush.xpose.msra.mxu0 0.0
    %217 = vmatpush.xpose.msra.mxu0 0.0
    %218 = vmatpush.xpose.msra.mxu0 0.0
    %219 = vmatpush.xpose.msra.mxu0 0.0
    %220 = vmatpush.xpose.msra.mxu0 0.0
    %221 = vmatpush.xpose.msra.mxu0 0.0
    %222 = vmatpush.xpose.msra.mxu0 0.0
    %223 = vmatpush.xpose.msra.mxu0 0.0
    %224 = vmatpush.xpose.msra.mxu0 0.0
    %225 = vmatpush.xpose.msra.mxu0 0.0
    %226 = vmatpush.xpose.msra.mxu0 %v209
    %227 = vmatmul.f32.gmra.mxu0 %v207
    %v228 = vpop.f32.mrf.mxu0
    %v229 = vadd.f32 0.0, %v228
    %230 = vdwg.mxu0
    %231 = vrot.lane.b32.xlu0 %v56, 120
    %v232 = vpop.permute.xlu0 %231
    %233 = vrot.lane.b32.xlu0 %v71, 88
    %v234 = vpop.permute.xlu0 %233
    %v235 = vsel %vm75, %v232, 0
    %v237 = vsel %vm75, %v234, 0
    %239 = vmatpush.xpose.msra.mxu0 0.0
    %240 = vmatpush.xpose.msra.mxu0 0.0
    %241 = vmatpush.xpose.msra.mxu0 0.0
    %242 = vmatpush.xpose.msra.mxu0 0.0
    %243 = vmatpush.xpose.msra.mxu0 0.0
    %244 = vmatpush.xpose.msra.mxu0 0.0
    %245 = vmatpush.xpose.msra.mxu0 0.0
    %246 = vmatpush.xpose.msra.mxu0 0.0
    %247 = vmatpush.xpose.msra.mxu0 0.0
    %248 = vmatpush.xpose.msra.mxu0 0.0
    %249 = vmatpush.xpose.msra.mxu0 0.0
    %250 = vmatpush.xpose.msra.mxu0 0.0
    %251 = vmatpush.xpose.msra.mxu0 0.0
    %252 = vmatpush.xpose.msra.mxu0 0.0
    %253 = vmatpush.xpose.msra.mxu0 0.0
    %254 = vmatpush.xpose.msra.mxu0 %v237
    %255 = vmatmul.f32.gmra.mxu0 %v235
    %v256 = vpop.f32.mrf.mxu0
    %v257 = vadd.f32 0.0, %v256
    %258 = vdwg.mxu0
    %v259 = vsel %vm75, %v229, -inf
    %260 = vmax.xlane.f32.xlu0 %v259
    %v261 = vpop.xlane.xlu0 %260
    %v262 = vsel %vm75, %v257, -inf
    %263 = vmax.xlane.f32.xlu0 %v262
    %v264 = vpop.xlane.xlu0 %263
    %v265 = vsub.f32 %v229, %v261
    %v266 = vsub.f32 %v257, %v264
    %v267 = vmul.f32 %v265, 1.442695
    %v268 = vpow.pop %v267
    %v269 = vmul.f32 %v266, 1.442695
    %v270 = vpow.pop %v269
    %v271 = vsel %vm75, %v268, 0.0
    %272 = vadd.xlane.f32.xlu0 %v271
    %v273 = vpop.xlane.xlu0 %272
    %v274 = vsel %vm75, %v270, 0.0
    %275 = vadd.xlane.f32.xlu0 %v274
    %v276 = vpop.xlane.xlu0 %275
    %v277 = vrcp.pop %v273
    %v278 = vrcp.pop %v276
    %v279 = vmul.f32 %v268, %v277
    %v280 = vmul.f32 %v270, %v278
    %281 = vrot.lane.b32.xlu0 %v53, 56
    %v282 = vpop.permute.xlu0 %281
    %v285 = vsel %vm75, %v279, 0
    %287 = vmatpush.msra.mxu0 0.0
    %288 = vmatpush.msra.mxu0 0.0
    %289 = vmatpush.msra.mxu0 0.0
    %290 = vmatpush.msra.mxu0 0.0
    %291 = vmatpush.msra.mxu0 0.0
    %292 = vmatpush.msra.mxu0 0.0
    %293 = vmatpush.msra.mxu0 0.0
    %294 = vmatpush.msra.mxu0 0.0
    %295 = vmatpush.msra.mxu0 0.0
    %296 = vmatpush.msra.mxu0 0.0
    %297 = vmatpush.msra.mxu0 0.0
    %298 = vmatpush.msra.mxu0 0.0
    %299 = vmatpush.msra.mxu0 0.0
    %300 = vmatpush.msra.mxu0 0.0
    %301 = vmatpush.msra.mxu0 0.0
    %302 = vmatpush.msra.mxu0 %v282
    %303 = vmatmul.f32.gmra.mxu0 %v285
    %v304 = vpop.f32.mrf.mxu0
    %v305 = vadd.f32 0.0, %v304
    %306 = vdwg.mxu0
    %307 = vrot.lane.b32.xlu0 %v56, 56
    %v308 = vpop.permute.xlu0 %307
    %v311 = vsel %vm75, %v280, 0
    %313 = vmatpush.msra.mxu0 0.0
    %314 = vmatpush.msra.mxu0 0.0
    %315 = vmatpush.msra.mxu0 0.0
    %316 = vmatpush.msra.mxu0 0.0
    %317 = vmatpush.msra.mxu0 0.0
    %318 = vmatpush.msra.mxu0 0.0
    %319 = vmatpush.msra.mxu0 0.0
    %320 = vmatpush.msra.mxu0 0.0
    %321 = vmatpush.msra.mxu0 0.0
    %322 = vmatpush.msra.mxu0 0.0
    %323 = vmatpush.msra.mxu0 0.0
    %324 = vmatpush.msra.mxu0 0.0
    %325 = vmatpush.msra.mxu0 0.0
    %326 = vmatpush.msra.mxu0 0.0
    %327 = vmatpush.msra.mxu0 0.0
    %328 = vmatpush.msra.mxu0 %v308
    %329 = vmatmul.f32.gmra.mxu0 %v311
    %v330 = vpop.f32.mrf.mxu0
    %v331 = vadd.f32 0.0, %v330
    %332 = vdwg.mxu0
    %333 = vrot.lane.b32.xlu0 %v53, 112
    %v334 = vpop.permute.xlu0 %333
    %335 = vrot.lane.b32.xlu0 %v70, 80
    %v336 = vpop.permute.xlu0 %335
    %v337 = vsel %vm75, %v334, 0
    %v339 = vsel %vm75, %v336, 0
    %341 = vmatpush.xpose.msra.mxu0 0.0
    %342 = vmatpush.xpose.msra.mxu0 0.0
    %343 = vmatpush.xpose.msra.mxu0 0.0
    %344 = vmatpush.xpose.msra.mxu0 0.0
    %345 = vmatpush.xpose.msra.mxu0 0.0
    %346 = vmatpush.xpose.msra.mxu0 0.0
    %347 = vmatpush.xpose.msra.mxu0 0.0
    %348 = vmatpush.xpose.msra.mxu0 0.0
    %349 = vmatpush.xpose.msra.mxu0 0.0
    %350 = vmatpush.xpose.msra.mxu0 0.0
    %351 = vmatpush.xpose.msra.mxu0 0.0
    %352 = vmatpush.xpose.msra.mxu0 0.0
    %353 = vmatpush.xpose.msra.mxu0 0.0
    %354 = vmatpush.xpose.msra.mxu0 0.0
    %355 = vmatpush.xpose.msra.mxu0 0.0
    %356 = vmatpush.xpose.msra.mxu0 %v339
    %357 = vmatmul.f32.gmra.mxu0 %v337
    %v358 = vpop.f32.mrf.mxu0
    %v359 = vadd.f32 0.0, %v358
    %360 = vdwg.mxu0
    %361 = vrot.lane.b32.xlu0 %v56, 112
    %v362 = vpop.permute.xlu0 %361
    %363 = vrot.lane.b32.xlu0 %v71, 80
    %v364 = vpop.permute.xlu0 %363
    %v365 = vsel %vm75, %v362, 0
    %v367 = vsel %vm75, %v364, 0
    %369 = vmatpush.xpose.msra.mxu0 0.0
    %370 = vmatpush.xpose.msra.mxu0 0.0
    %371 = vmatpush.xpose.msra.mxu0 0.0
    %372 = vmatpush.xpose.msra.mxu0 0.0
    %373 = vmatpush.xpose.msra.mxu0 0.0
    %374 = vmatpush.xpose.msra.mxu0 0.0
    %375 = vmatpush.xpose.msra.mxu0 0.0
    %376 = vmatpush.xpose.msra.mxu0 0.0
    %377 = vmatpush.xpose.msra.mxu0 0.0
    %378 = vmatpush.xpose.msra.mxu0 0.0
    %379 = vmatpush.xpose.msra.mxu0 0.0
    %380 = vmatpush.xpose.msra.mxu0 0.0
    %381 = vmatpush.xpose.msra.mxu0 0.0
    %382 = vmatpush.xpose.msra.mxu0 0.0
    %383 = vmatpush.xpose.msra.mxu0 0.0
    %384 = vmatpush.xpose.msra.mxu0 %v367
    %385 = vmatmul.f32.gmra.mxu0 %v365
    %v386 = vpop.f32.mrf.mxu0
    %v387 = vadd.f32 0.0, %v386
    %388 = vdwg.mxu0
    %v389 = vsel %vm75, %v359, -inf
    %390 = vmax.xlane.f32.xlu0 %v389
    %v391 = vpop.xlane.xlu0 %390
    %v392 = vsel %vm75, %v387, -inf
    %393 = vmax.xlane.f32.xlu0 %v392
    %v394 = vpop.xlane.xlu0 %393
    %v395 = vsub.f32 %v359, %v391
    %v396 = vsub.f32 %v387, %v394
    %v397 = vmul.f32 %v395, 1.442695
    %v398 = vpow.pop %v397
    %v399 = vmul.f32 %v396, 1.442695
    %v400 = vpow.pop %v399
    %v401 = vsel %vm75, %v398, 0.0
    %402 = vadd.xlane.f32.xlu0 %v401
    %v403 = vpop.xlane.xlu0 %402
    %v404 = vsel %vm75, %v400, 0.0
    %405 = vadd.xlane.f32.xlu0 %v404
    %v406 = vpop.xlane.xlu0 %405
    %v407 = vrcp.pop %v403
    %v408 = vrcp.pop %v406
    %v409 = vmul.f32 %v398, %v407
    %v410 = vmul.f32 %v400, %v408
    %411 = vrot.lane.b32.xlu0 %v53, 48
    %v412 = vpop.permute.xlu0 %411
    %v415 = vsel %vm75, %v409, 0
    %417 = vmatpush.msra.mxu0 0.0
    %418 = vmatpush.msra.mxu0 0.0
    %419 = vmatpush.msra.mxu0 0.0
    %420 = vmatpush.msra.mxu0 0.0
    %421 = vmatpush.msra.mxu0 0.0
    %422 = vmatpush.msra.mxu0 0.0
    %423 = vmatpush.msra.mxu0 0.0
    %424 = vmatpush.msra.mxu0 0.0
    %425 = vmatpush.msra.mxu0 0.0
    %426 = vmatpush.msra.mxu0 0.0
    %427 = vmatpush.msra.mxu0 0.0
    %428 = vmatpush.msra.mxu0 0.0
    %429 = vmatpush.msra.mxu0 0.0
    %430 = vmatpush.msra.mxu0 0.0
    %431 = vmatpush.msra.mxu0 0.0
    %432 = vmatpush.msra.mxu0 %v412
    %433 = vmatmul.f32.gmra.mxu0 %v415
    %v434 = vpop.f32.mrf.mxu0
    %v435 = vadd.f32 0.0, %v434
    %436 = vdwg.mxu0
    %437 = vrot.lane.b32.xlu0 %v56, 48
    %v438 = vpop.permute.xlu0 %437
    %v441 = vsel %vm75, %v410, 0
    %443 = vmatpush.msra.mxu0 0.0
    %444 = vmatpush.msra.mxu0 0.0
    %445 = vmatpush.msra.mxu0 0.0
    %446 = vmatpush.msra.mxu0 0.0
    %447 = vmatpush.msra.mxu0 0.0
    %448 = vmatpush.msra.mxu0 0.0
    %449 = vmatpush.msra.mxu0 0.0
    %450 = vmatpush.msra.mxu0 0.0
    %451 = vmatpush.msra.mxu0 0.0
    %452 = vmatpush.msra.mxu0 0.0
    %453 = vmatpush.msra.mxu0 0.0
    %454 = vmatpush.msra.mxu0 0.0
    %455 = vmatpush.msra.mxu0 0.0
    %456 = vmatpush.msra.mxu0 0.0
    %457 = vmatpush.msra.mxu0 0.0
    %458 = vmatpush.msra.mxu0 %v438
    %459 = vmatmul.f32.gmra.mxu0 %v441
    %v460 = vpop.f32.mrf.mxu0
    %v461 = vadd.f32 0.0, %v460
    %462 = vdwg.mxu0
    %463 = vrot.lane.b32.xlu0 %v53, 104
    %v464 = vpop.permute.xlu0 %463
    %465 = vrot.lane.b32.xlu0 %v70, 72
    %v466 = vpop.permute.xlu0 %465
    %v467 = vsel %vm75, %v464, 0
    %v469 = vsel %vm75, %v466, 0
    %471 = vmatpush.xpose.msra.mxu0 0.0
    %472 = vmatpush.xpose.msra.mxu0 0.0
    %473 = vmatpush.xpose.msra.mxu0 0.0
    %474 = vmatpush.xpose.msra.mxu0 0.0
    %475 = vmatpush.xpose.msra.mxu0 0.0
    %476 = vmatpush.xpose.msra.mxu0 0.0
    %477 = vmatpush.xpose.msra.mxu0 0.0
    %478 = vmatpush.xpose.msra.mxu0 0.0
    %479 = vmatpush.xpose.msra.mxu0 0.0
    %480 = vmatpush.xpose.msra.mxu0 0.0
    %481 = vmatpush.xpose.msra.mxu0 0.0
    %482 = vmatpush.xpose.msra.mxu0 0.0
    %483 = vmatpush.xpose.msra.mxu0 0.0
    %484 = vmatpush.xpose.msra.mxu0 0.0
    %485 = vmatpush.xpose.msra.mxu0 0.0
    %486 = vmatpush.xpose.msra.mxu0 %v469
    %487 = vmatmul.f32.gmra.mxu0 %v467
    %v488 = vpop.f32.mrf.mxu0
    %v489 = vadd.f32 0.0, %v488
    %490 = vdwg.mxu0
    %491 = vrot.lane.b32.xlu0 %v56, 104
    %v492 = vpop.permute.xlu0 %491
    %493 = vrot.lane.b32.xlu0 %v71, 72
    %v494 = vpop.permute.xlu0 %493
    %v495 = vsel %vm75, %v492, 0
    %v497 = vsel %vm75, %v494, 0
    %499 = vmatpush.xpose.msra.mxu0 0.0
    %500 = vmatpush.xpose.msra.mxu0 0.0
    %501 = vmatpush.xpose.msra.mxu0 0.0
    %502 = vmatpush.xpose.msra.mxu0 0.0
    %503 = vmatpush.xpose.msra.mxu0 0.0
    %504 = vmatpush.xpose.msra.mxu0 0.0
    %505 = vmatpush.xpose.msra.mxu0 0.0
    %506 = vmatpush.xpose.msra.mxu0 0.0
    %507 = vmatpush.xpose.msra.mxu0 0.0
    %508 = vmatpush.xpose.msra.mxu0 0.0
    %509 = vmatpush.xpose.msra.mxu0 0.0
    %510 = vmatpush.xpose.msra.mxu0 0.0
    %511 = vmatpush.xpose.msra.mxu0 0.0
    %512 = vmatpush.xpose.msra.mxu0 0.0
    %513 = vmatpush.xpose.msra.mxu0 0.0
    %514 = vmatpush.xpose.msra.mxu0 %v497
    %515 = vmatmul.f32.gmra.mxu0 %v495
    %v516 = vpop.f32.mrf.mxu0
    %v517 = vadd.f32 0.0, %v516
    %518 = vdwg.mxu0
    %v519 = vsel %vm75, %v489, -inf
    %520 = vmax.xlane.f32.xlu0 %v519
    %v521 = vpop.xlane.xlu0 %520
    %v522 = vsel %vm75, %v517, -inf
    %523 = vmax.xlane.f32.xlu0 %v522
    %v524 = vpop.xlane.xlu0 %523
    %v525 = vsub.f32 %v489, %v521
    %v526 = vsub.f32 %v517, %v524
    %v527 = vmul.f32 %v525, 1.442695
    %v528 = vpow.pop %v527
    %v529 = vmul.f32 %v526, 1.442695
    %v530 = vpow.pop %v529
    %v531 = vsel %vm75, %v528, 0.0
    %532 = vadd.xlane.f32.xlu0 %v531
    %v533 = vpop.xlane.xlu0 %532
    %v534 = vsel %vm75, %v530, 0.0
    %535 = vadd.xlane.f32.xlu0 %v534
    %v536 = vpop.xlane.xlu0 %535
    %v537 = vrcp.pop %v533
    %v538 = vrcp.pop %v536
    %v539 = vmul.f32 %v528, %v537
    %v540 = vmul.f32 %v530, %v538
    %541 = vrot.lane.b32.xlu0 %v53, 40
    %v542 = vpop.permute.xlu0 %541
    %v545 = vsel %vm75, %v539, 0
    %547 = vmatpush.msra.mxu0 0.0
    %548 = vmatpush.msra.mxu0 0.0
    %549 = vmatpush.msra.mxu0 0.0
    %550 = vmatpush.msra.mxu0 0.0
    %551 = vmatpush.msra.mxu0 0.0
    %552 = vmatpush.msra.mxu0 0.0
    %553 = vmatpush.msra.mxu0 0.0
    %554 = vmatpush.msra.mxu0 0.0
    %555 = vmatpush.msra.mxu0 0.0
    %556 = vmatpush.msra.mxu0 0.0
    %557 = vmatpush.msra.mxu0 0.0
    %558 = vmatpush.msra.mxu0 0.0
    %559 = vmatpush.msra.mxu0 0.0
    %560 = vmatpush.msra.mxu0 0.0
    %561 = vmatpush.msra.mxu0 0.0
    %562 = vmatpush.msra.mxu0 %v542
    %563 = vmatmul.f32.gmra.mxu0 %v545
    %v564 = vpop.f32.mrf.mxu0
    %v565 = vadd.f32 0.0, %v564
    %566 = vdwg.mxu0
    %567 = vrot.lane.b32.xlu0 %v56, 40
    %v568 = vpop.permute.xlu0 %567
    %v571 = vsel %vm75, %v540, 0
    %573 = vmatpush.msra.mxu0 0.0
    %574 = vmatpush.msra.mxu0 0.0
    %575 = vmatpush.msra.mxu0 0.0
    %576 = vmatpush.msra.mxu0 0.0
    %577 = vmatpush.msra.mxu0 0.0
    %578 = vmatpush.msra.mxu0 0.0
    %579 = vmatpush.msra.mxu0 0.0
    %580 = vmatpush.msra.mxu0 0.0
    %581 = vmatpush.msra.mxu0 0.0
    %582 = vmatpush.msra.mxu0 0.0
    %583 = vmatpush.msra.mxu0 0.0
    %584 = vmatpush.msra.mxu0 0.0
    %585 = vmatpush.msra.mxu0 0.0
    %586 = vmatpush.msra.mxu0 0.0
    %587 = vmatpush.msra.mxu0 0.0
    %588 = vmatpush.msra.mxu0 %v568
    %589 = vmatmul.f32.gmra.mxu0 %v571
    %v590 = vpop.f32.mrf.mxu0
    %v591 = vadd.f32 0.0, %v590
    %592 = vdwg.mxu0
    %595 = vrot.lane.b32.xlu0 %v305, 8
    %v596 = vpop.permute.xlu0 %595
    %597 = vrot.lane.b32.xlu0 %v331, 8
    %v598 = vpop.permute.xlu0 %597
    %603 = vrot.lane.b32.xlu0 %v435, 16
    %v604 = vpop.permute.xlu0 %603
    %605 = vrot.lane.b32.xlu0 %v461, 16
    %v606 = vpop.permute.xlu0 %605
    %611 = vrot.lane.b32.xlu0 %v565, 24
    %v612 = vpop.permute.xlu0 %611
    %613 = vrot.lane.b32.xlu0 %v591, 24
    %v614 = vpop.permute.xlu0 %613
    %v617 = vsel %vm75, %v175, %v596
    %v618 = vsel %vm75, %v201, %v598
    %vm619 = vcmask 130048
    %v620 = vsel %vm619, %v617, %v604
    %v621 = vsel %vm619, %v618, %v606
    %vm622 = vcmask 195584
    %v623 = vsel %vm622, %v620, %v612
    %v624 = vsel %vm622, %v621, %v614
    %625 = vst.msk [vmem:[#allocation2] sm:$0xff] %vm28, %v623
    %626 = vst.msk [vmem:[#allocation2 + $0x8] sm:$0xff] %vm28, %v624
    // Predicated region
    $region18: #{bert_self_attention.1} parent=1 // pred_check
      _
    $region19: #{bert_self_attention.1} parent=1 // pred_check_branch
      %628 = sbr.rel (0) target = $region21
    $region20: #{bert_self_attention.1} parent=1 // pred_region
      %630 = vsyncadd [#allocation3], 0
      %s631 = sshll.u32 [#allocation2], 4
      %s632 = int_to_ptr.vmem [resolvable:$true] %s631
      %s633 = sshll.u32 %s4, 4
      %s634 = int_to_ptr.hbm [resolvable:$true] %s633
      %639 = dma.vmem_to_hbm [thread:$0]  %s632, 256, %s634, [#allocation3], 128, 128, 8
    $region21: #{bert_self_attention.1} parent=1 // pred_fallthru
      _
    // Predicated region
    $region22: #{bert_self_attention.1} parent=1 // pred_check
      _
    $region23: #{bert_self_attention.1} parent=1 // pred_check_branch
      %641 = sbr.rel (0) target = $region25
    $region24: #{bert_self_attention.1} parent=1 // pred_region
      %643 = dma.done [#allocation3], 256
    $region25: #{bert_self_attention.1} parent=1 // pred_fallthru
      _
    %644 = vsyncpa [#allocation3], 1

</llo_original>
